<compile_context>
chip_gen: v7x
topology: tpu7x:2x2x1
jax: 0.10.0
libtpu: 0.0.40
codegen_flags: <defaults>
</compile_context>

<pallas_src>
import functools
import math

import jax
import jax.numpy as jnp
from jax.experimental import pallas as pl
from jax.experimental.pallas import tpu as pltpu

_EPS_LOG = 1e-20    # numerical guard inside the log
_EPS_MEAN = 1e-5    # clamp of the mean mask, as in the PyTorch module

# int32 (two's complement) views of the usual 32-bit mixing constants
_GOLD = -1640531527     # 0x9E3779B9
_MIX1 = -2048144789     # 0x85EBCA6B
_MIX2 = -1028477387     # 0xC2B2AE35
_COLP = -2048144777     # 0x85EBCA77


def _round_up(x, m):
    return ((x + m - 1) // m) * m


def _srl(h, k):
    """Logical right shift of an int32 array (arithmetic shift + mask)."""
    return (h >> k) & ((1 << (32 - k)) - 1)


def _fmix32(h):
    """murmur3 32-bit finalizer (wrapping int32 arithmetic, VPU-only ops)."""
    h = h ^ _srl(h, 16)
    h = h * _MIX1
    h = h ^ _srl(h, 13)
    h = h * _MIX2
    h = h ^ _srl(h, 16)
    return h


def _vb_dropout_kernel(seed_ref, x_ref, side_ref, o_ref, *,
                       inv_temp, row_tile, col_tile):
    # seed_ref : (1,)              int32 (SMEM, scalar prefetch)
    # x_ref    : (row_tile, col_tile)  native dtype
    # side_ref : (row_tile, 2)     f32  col0: a = -logit/T, col1: 1/clip(1-p,1e-5,1)
    i = pl.program_id(0)
    j = pl.program_id(1)
    shape = x_ref.shape

    # ---- counter-based uniform noise keyed on absolute element coordinates ----
    r = jax.lax.broadcasted_iota(jnp.int32, shape, 0) + i * row_tile
    c = jax.lax.broadcasted_iota(jnp.int32, shape, 1) + j * col_tile
    h = _fmix32(r * _GOLD + seed_ref[0])
    h = _fmix32(h ^ (c * _COLP))
    # top 23 bits -> uniform float in [0, 1)
    u = _srl(h, 9).astype(jnp.float32) * jnp.float32(1.0 / (1 << 23))

    # ---- concrete (relaxed Bernoulli) keep-mask -------------------------------
    a = side_ref[:, 0:1]                       # (row_tile, 1) broadcasts over lanes
    inv_mean = side_ref[:, 1:2]                # (row_tile, 1)
    noise_logit = jnp.log((u + _EPS_LOG) / (1.0 - u + _EPS_LOG))   # one log + one div
    z = noise_logit * inv_temp + a
    keep = 0.5 * jnp.tanh(0.5 * z) + 0.5       # == sigmoid(z), single EUP tanh

    x = x_ref[...].astype(jnp.float32)
    o_ref[...] = (x * (keep * inv_mean)).astype(o_ref.dtype)


def variational_bernoulli_dropout(x, inv_sigmoid_droprate, seed, *,
                                  temperature=0.001, training=True, st=1):
    """Forward of VariationalBernoulliDropout for 4-D NCHW input.

    x                    : (N, C, H, W)   any float dtype (kept end-to-end)
    inv_sigmoid_droprate : (C,)           posterior droprate logits (the nn.Parameter)
    seed                 : int            seed for the in-kernel counter-based RNG
    """
    # TODO(synk): 2-D (fully-connected) input branch of the PyTorch forward not implemented here.
    if not (training and st == 1):
        return x

    N, C, H, W = x.shape
    NC, HW = N * C, H * W
    out_dtype = x.dtype
    itemsize = jnp.dtype(x.dtype).itemsize

    # ---- tiny per-channel precompute, hoisted out of the kernel ---------------
    logit = inv_sigmoid_droprate.astype(jnp.float32)
    p = jax.nn.sigmoid(logit)
    a_c = -logit / temperature                          # == (log(1-p) - log(p)) / T
    inv_mean_c = 1.0 / jnp.clip(1.0 - p, _EPS_MEAN, 1.0)
    side = jnp.broadcast_to(jnp.stack([a_c, inv_mean_c], axis=-1)[None],
                            (N, C, 2)).reshape(NC, 2)   # one merged side stream

    x2 = x.reshape(NC, HW)                              # free: NCHW is contiguous

    # ---- tile selection: lane-dense, ~1M-element blocks, no padded copies -----
    sub = max(8, 32 // itemsize)                        # sublane multiple (8 f32 / 16 bf16 / 32 i8)
    MAX_LANES = 2048
    ELEM_BUDGET = 1 << 20                               # ~4 MiB of f32 temps per block
    COL_TILE = HW if HW <= MAX_LANES else MAX_LANES     # full extent, or multiple of 128
    row_target = max(sub, (ELEM_BUDGET // COL_TILE) // sub * sub)
    ROW_TILE = NC if NC <= row_target else row_target

    # v7x megacore: make sure the "parallel" grid has at least 2 steps
    if pl.cdiv(NC, ROW_TILE) * pl.cdiv(HW, COL_TILE) < 2:
        if HW > 128:
            COL_TILE = _round_up(pl.cdiv(HW, 2), 128)
        elif NC > sub:
            ROW_TILE = _round_up(pl.cdiv(NC, 2), sub)

    grid = (pl.cdiv(NC, ROW_TILE), pl.cdiv(HW, COL_TILE))
    seed_arr = jnp.atleast_1d(jnp.asarray(seed, dtype=jnp.int32))

    n_elem = NC * HW
    cost = pl.CostEstimate(
        flops=40 * n_elem,                              # hash + elementwise math
        transcendentals=3 * n_elem,                     # log, div, tanh
        bytes_accessed=2 * n_elem * itemsize + NC * 8)

    out2 = pl.pallas_call(
        functools.partial(_vb_dropout_kernel, inv_temp=float(1.0 / temperature),
                          row_tile=ROW_TILE, col_tile=COL_TILE),
        out_shape=jax.ShapeDtypeStruct((NC, HW), out_dtype),
        grid_spec=pltpu.PrefetchScalarGridSpec(
            num_scalar_prefetch=1,                      # seed -> SMEM
            grid=grid,
            in_specs=[
                pl.BlockSpec((ROW_TILE, COL_TILE), lambda i, j, s: (i, j)),
                # per-row constants; constant in j (fast axis) so only re-fetched
                # when the row tile changes.
                pl.BlockSpec((ROW_TILE, 2), lambda i, j, s: (i, 0)),
            ],
            out_specs=pl.BlockSpec((ROW_TILE, COL_TILE), lambda i, j, s: (i, j)),
        ),
        compiler_params=pltpu.CompilerParams(
            dimension_semantics=("parallel", "parallel"),
            vmem_limit_bytes=48 * 1024 * 1024),
        cost_estimate=cost,
    )(seed_arr, x2, side)

    return out2.reshape(N, C, H, W)


if __name__ == "__main__":
    key = jax.random.PRNGKey(0)
    k_x, k_param = jax.random.split(key, 2)

    N, C, H, W = 2, 4, 16, 16
    x = jax.random.normal(k_x, (N, C, H, W), dtype=jnp.float32)
    # module default: prior logits ~ N(0,1) copied into the posterior logits
    inv_sigmoid_droprate = jax.random.normal(k_param, (C,), dtype=jnp.float32)
    temperature = 0.001
    seed = 1234

    # main forward
    out = variational_bernoulli_dropout(
        x, inv_sigmoid_droprate, seed,
        temperature=temperature, training=True, st=1)
    jax.block_until_ready(out)
    assert out.shape == x.shape and bool(jnp.all(jnp.isfinite(out)))

    # determinism: same seed -> bitwise identical output
    out_again = variational_bernoulli_dropout(
        x, inv_sigmoid_droprate, seed,
        temperature=temperature, training=True, st=1)
    assert bool(jnp.array_equal(out, out_again))

    # limit check 1: droprate -> 0 (logit = -60) => keep-mask == 1 => identity
    out_keep = variational_bernoulli_dropout(
        x, jnp.full((C,), -60.0, jnp.float32), seed, temperature=temperature)
    assert bool(jnp.allclose(out_keep, x, rtol=1e-6, atol=1e-6))

    # limit check 2: droprate -> 1 (logit = +60) => keep-mask == 0 => all zeros
    out_drop = variational_bernoulli_dropout(
        x, jnp.full((C,), 60.0, jnp.float32), seed, temperature=temperature)
    assert bool(jnp.allclose(out_drop, 0.0, atol=1e-6))

    # statistical check: p = 0.3 on all-ones input -> mask values in [0, 1/0.7],
    # keep fraction ~ 0.7 (validates the in-kernel uniform generation)
    logit_03 = jnp.full((C,), math.log(0.3 / 0.7), jnp.float32)
    ones = jnp.ones((N, C, H, W), jnp.float32)
    mask = variational_bernoulli_dropout(ones, logit_03, seed,
                                         temperature=temperature)
    inv_mean = 1.0 / 0.7
    assert bool(jnp.all(mask >= -1e-4)) and bool(jnp.all(mask <= inv_mean + 1e-3))
    keep_frac = float(jnp.mean((mask > 0.5 * inv_mean).astype(jnp.float32)))
    assert 0.55 < keep_frac < 0.85, keep_frac

    # non-divisible shapes: exercises partial edge blocks (no padding copies)
    x_odd = jax.random.normal(k_x, (3, 5, 11, 13), dtype=jnp.float32)
    logits_odd = jax.random.normal(k_param, (5,), dtype=jnp.float32)
    out_odd = variational_bernoulli_dropout(x_odd, logits_odd, seed,
                                            temperature=temperature)
    jax.block_until_ready(out_odd)
    assert out_odd.shape == x_odd.shape and bool(jnp.all(jnp.isfinite(out_odd)))

    # eval path (identity)
    out_eval = variational_bernoulli_dropout(
        x, inv_sigmoid_droprate, seed, training=False, st=0)
    assert bool(jnp.array_equal(out_eval, x))

    print("KERNEL_OK")
</pallas_src>

<mosaic_0001>
module attributes {stable_mosaic.version = 11 : i64} {
  func.func @_vb_dropout_kernel(%arg0: i32, %arg1: i32, %arg2: memref<1xi32, #tpu.memory_space<smem>>, %arg3: memref<8x128xf32, #tpu.memory_space<vmem>>, %arg4: memref<8x2xf32, #tpu.memory_space<vmem>>, %arg5: memref<8x128xf32, #tpu.memory_space<vmem>>) attributes {dimension_semantics = [#tpu.dimension_semantics<parallel>, #tpu.dimension_semantics<parallel>], iteration_bounds = array<i64: 1, 2>, scalar_prefetch = 1 : i64, scratch_operands = 0 : i64, tpu.core_type = #tpu.core_type<tc>, window_params = [{transform_indices = @transform_0, window_bounds = array<i64: 8, 128>}, {transform_indices = @transform_1, window_bounds = array<i64: 8, 2>}, {transform_indices = @transform_2, window_bounds = array<i64: 8, 128>}]} {
    %0 = tpu.iota {dimensions = array<i32: 0>} : vector<8x128xi32>
    %c8_i32 = arith.constant 8 : i32
    %1 = arith.muli %arg0, %c8_i32 : i32
    %2 = vector.broadcast %1 : i32 to vector<8x128xi32>
    %3 = arith.addi %0, %2 : vector<8x128xi32>
    %4 = tpu.iota {dimensions = array<i32: 1>} : vector<8x128xi32>
    %c128_i32 = arith.constant 128 : i32
    %5 = arith.muli %arg1, %c128_i32 : i32
    %6 = vector.broadcast %5 : i32 to vector<8x128xi32>
    %7 = arith.addi %4, %6 : vector<8x128xi32>
    %c-1640531527_i32 = arith.constant -1640531527 : i32
    %8 = vector.broadcast %c-1640531527_i32 : i32 to vector<8x128xi32>
    %9 = arith.muli %3, %8 : vector<8x128xi32>
    %c0 = arith.constant 0 : index
    %10 = memref.load %arg2[%c0] : memref<1xi32, #tpu.memory_space<smem>>
    %11 = vector.broadcast %10 : i32 to vector<8x128xi32>
    %12 = arith.addi %9, %11 : vector<8x128xi32>
    %c16_i32 = arith.constant 16 : i32
    %13 = vector.broadcast %c16_i32 : i32 to vector<8x128xi32>
    %14 = arith.shrsi %12, %13 : vector<8x128xi32>
    %c65535_i32 = arith.constant 65535 : i32
    %15 = vector.broadcast %c65535_i32 : i32 to vector<8x128xi32>
    %16 = arith.andi %14, %15 : vector<8x128xi32>
    %17 = arith.xori %12, %16 : vector<8x128xi32>
    %c-2048144789_i32 = arith.constant -2048144789 : i32
    %18 = vector.broadcast %c-2048144789_i32 : i32 to vector<8x128xi32>
    %19 = arith.muli %17, %18 : vector<8x128xi32>
    %c13_i32 = arith.constant 13 : i32
    %20 = vector.broadcast %c13_i32 : i32 to vector<8x128xi32>
    %21 = arith.shrsi %19, %20 : vector<8x128xi32>
    %c524287_i32 = arith.constant 524287 : i32
    %22 = vector.broadcast %c524287_i32 : i32 to vector<8x128xi32>
    %23 = arith.andi %21, %22 : vector<8x128xi32>
    %24 = arith.xori %19, %23 : vector<8x128xi32>
    %c-1028477387_i32 = arith.constant -1028477387 : i32
    %25 = vector.broadcast %c-1028477387_i32 : i32 to vector<8x128xi32>
    %26 = arith.muli %24, %25 : vector<8x128xi32>
    %c16_i32_0 = arith.constant 16 : i32
    %27 = vector.broadcast %c16_i32_0 : i32 to vector<8x128xi32>
    %28 = arith.shrsi %26, %27 : vector<8x128xi32>
    %c65535_i32_1 = arith.constant 65535 : i32
    %29 = vector.broadcast %c65535_i32_1 : i32 to vector<8x128xi32>
    %30 = arith.andi %28, %29 : vector<8x128xi32>
    %31 = arith.xori %26, %30 : vector<8x128xi32>
    %c-2048144777_i32 = arith.constant -2048144777 : i32
    %32 = vector.broadcast %c-2048144777_i32 : i32 to vector<8x128xi32>
    %33 = arith.muli %7, %32 : vector<8x128xi32>
    %34 = arith.xori %31, %33 : vector<8x128xi32>
    %c16_i32_2 = arith.constant 16 : i32
    %35 = vector.broadcast %c16_i32_2 : i32 to vector<8x128xi32>
    %36 = arith.shrsi %34, %35 : vector<8x128xi32>
    %c65535_i32_3 = arith.constant 65535 : i32
    %37 = vector.broadcast %c65535_i32_3 : i32 to vector<8x128xi32>
    %38 = arith.andi %36, %37 : vector<8x128xi32>
    %39 = arith.xori %34, %38 : vector<8x128xi32>
    %c-2048144789_i32_4 = arith.constant -2048144789 : i32
    %40 = vector.broadcast %c-2048144789_i32_4 : i32 to vector<8x128xi32>
    %41 = arith.muli %39, %40 : vector<8x128xi32>
    %c13_i32_5 = arith.constant 13 : i32
    %42 = vector.broadcast %c13_i32_5 : i32 to vector<8x128xi32>
    %43 = arith.shrsi %41, %42 : vector<8x128xi32>
    %c524287_i32_6 = arith.constant 524287 : i32
    %44 = vector.broadcast %c524287_i32_6 : i32 to vector<8x128xi32>
    %45 = arith.andi %43, %44 : vector<8x128xi32>
    %46 = arith.xori %41, %45 : vector<8x128xi32>
    %c-1028477387_i32_7 = arith.constant -1028477387 : i32
    %47 = vector.broadcast %c-1028477387_i32_7 : i32 to vector<8x128xi32>
    %48 = arith.muli %46, %47 : vector<8x128xi32>
    %c16_i32_8 = arith.constant 16 : i32
    %49 = vector.broadcast %c16_i32_8 : i32 to vector<8x128xi32>
    %50 = arith.shrsi %48, %49 : vector<8x128xi32>
    %c65535_i32_9 = arith.constant 65535 : i32
    %51 = vector.broadcast %c65535_i32_9 : i32 to vector<8x128xi32>
    %52 = arith.andi %50, %51 : vector<8x128xi32>
    %53 = arith.xori %48, %52 : vector<8x128xi32>
    %c9_i32 = arith.constant 9 : i32
    %54 = vector.broadcast %c9_i32 : i32 to vector<8x128xi32>
    %55 = arith.shrsi %53, %54 : vector<8x128xi32>
    %c8388607_i32 = arith.constant 8388607 : i32
    %56 = vector.broadcast %c8388607_i32 : i32 to vector<8x128xi32>
    %57 = arith.andi %55, %56 : vector<8x128xi32>
    %58 = arith.sitofp %57 : vector<8x128xi32> to vector<8x128xf32>
    %cst = arith.constant 1.1920929E-7 : f32
    %59 = vector.broadcast %cst : f32 to vector<8x128xf32>
    %60 = arith.mulf %58, %59 : vector<8x128xf32>
    %c0_10 = arith.constant 0 : index
    %c0_11 = arith.constant 0 : index
    %61 = vector.load %arg4[%c0_10, %c0_11] : memref<8x2xf32, #tpu.memory_space<vmem>>, vector<8x1xf32>
    %c0_12 = arith.constant 0 : index
    %c1 = arith.constant 1 : index
    %62 = vector.load %arg4[%c0_12, %c1] : memref<8x2xf32, #tpu.memory_space<vmem>>, vector<8x1xf32>
    %cst_13 = arith.constant 9.99999968E-21 : f32
    %63 = vector.broadcast %cst_13 : f32 to vector<8x128xf32>
    %64 = arith.addf %60, %63 : vector<8x128xf32>
    %cst_14 = arith.constant 1.000000e+00 : f32
    %65 = vector.broadcast %cst_14 : f32 to vector<8x128xf32>
    %66 = arith.subf %65, %60 : vector<8x128xf32>
    %cst_15 = arith.constant 9.99999968E-21 : f32
    %67 = vector.broadcast %cst_15 : f32 to vector<8x128xf32>
    %68 = arith.addf %66, %67 : vector<8x128xf32>
    %69 = arith.divf %64, %68 : vector<8x128xf32>
    %70 = math.log %69 : vector<8x128xf32>
    %cst_16 = arith.constant 1.000000e+03 : f32
    %71 = vector.broadcast %cst_16 : f32 to vector<8x128xf32>
    %72 = arith.mulf %70, %71 : vector<8x128xf32>
    %73 = vector.broadcast %61 : vector<8x1xf32> to vector<8x128xf32>
    %74 = arith.addf %72, %73 : vector<8x128xf32>
    %cst_17 = arith.constant 5.000000e-01 : f32
    %75 = vector.broadcast %cst_17 : f32 to vector<8x128xf32>
    %76 = arith.mulf %75, %74 : vector<8x128xf32>
    %77 = math.tanh %76 : vector<8x128xf32>
    %cst_18 = arith.constant 5.000000e-01 : f32
    %78 = vector.broadcast %cst_18 : f32 to vector<8x128xf32>
    %79 = arith.mulf %78, %77 : vector<8x128xf32>
    %cst_19 = arith.constant 5.000000e-01 : f32
    %80 = vector.broadcast %cst_19 : f32 to vector<8x128xf32>
    %81 = arith.addf %79, %80 : vector<8x128xf32>
    %c0_20 = arith.constant 0 : index
    %c0_21 = arith.constant 0 : index
    %82 = vector.load %arg3[%c0_20, %c0_21] : memref<8x128xf32, #tpu.memory_space<vmem>>, vector<8x128xf32>
    %83 = vector.broadcast %62 : vector<8x1xf32> to vector<8x128xf32>
    %84 = arith.mulf %81, %83 : vector<8x128xf32>
    %85 = arith.mulf %82, %84 : vector<8x128xf32>
    %c0_22 = arith.constant 0 : index
    %c0_23 = arith.constant 0 : index
    %86 = vector.load %arg5[%c0_22, %c0_23] : memref<8x128xf32, #tpu.memory_space<vmem>>, vector<8x128xf32>
    tpu.vector_store %arg5[%c0_22, %c0_23], %85 {strides = array<i32>} : memref<8x128xf32, #tpu.memory_space<vmem>>, vector<8x128xf32>,
    return
  }
  func.func @transform_0(%arg0: i32, %arg1: i32, %arg2: memref<1xi32, #tpu.memory_space<smem>>) -> (i32, i32) {
    %c0_i32 = arith.constant 0 : i32
    return %arg0, %arg1 : i32, i32
  }
  func.func @transform_1(%arg0: i32, %arg1: i32, %arg2: memref<1xi32, #tpu.memory_space<smem>>) -> (i32, i32) {
    %c0_i32 = arith.constant 0 : i32
    %c0_i32_0 = arith.constant 0 : i32
    return %arg0, %c0_i32 : i32, i32
  }
  func.func @transform_2(%arg0: i32, %arg1: i32, %arg2: memref<1xi32, #tpu.memory_space<smem>>) -> (i32, i32) {
    %c0_i32 = arith.constant 0 : i32
    return %arg0, %arg1 : i32, i32
  }
}

</mosaic_0001>

<llo_original>
// kernel: tpu_custom_call.1
$region0: #{tpu_custom_call.1}
  #allocation0 [shape = 'u32[]', space=smem, size = 0x4, offset = 0x4, fixed_abs, tag = 'smem constant byte address 0x4 - core index']
  #allocation1 [shape = 'u32[144,128]{1,0:T(1,128)}', space=vmem, size = 0x12000, scoped, tag = 'internal scratch']
  #allocation2 [shape = 's32[1]{0}', space=sflag, size = 0x4, scoped, tag = 'scoped memory for tpu_custom_call.1']
  #allocation3 [shape = 's32[1]{0:T(128)S(6)}', space=smem, size = 0x200, scoped, tag = 'prefetched SMEM operand 0']
  %s0 = inlined_call_operand.<no memory space> [shape: s32[1], index: 0, kind: input, shape index: {}]
  %s1 = inlined_call_operand.hbm [shape: f32[8,256], index: 1, kind: input, shape index: {}]
  %s2 = inlined_call_operand.vmem [shape: f32[8,2], index: 2, kind: input, shape index: {}]
  %s3 = inlined_call_operand.hbm [shape: f32[8,256], index: 3, kind: output, shape index: {}]
  %s4 = sld [smem:[#allocation0]]
  $region45: #{tpu_custom_call.1} parent=0
    _
  %s6 = ssub.s32 1, %s4
  %s7 = scalar_select 0, %s6, %s4
  %8 = sst [smem:[#allocation3]] %s0
  $region1: #{tpu_custom_call.1} parent=0
    #allocation4 [shape = 'u8[8192]{0}', space=vmem, size = 0x2000, scoped, tag = 'input window, operand 1']
    #allocation5 [shape = 's32[2]{0}', space=sflag, size = 0x8, scoped, tag = 'scoped memory for tpu_custom_call.1']
    #allocation6 [shape = 's32[2]{0}', space=sflag, size = 0x8, scoped, tag = 'scoped memory for tpu_custom_call.1']
    #allocation7 [shape = 'u8[8192]{0}', space=vmem, size = 0x2000, scoped, tag = 'output window, operand 0']
    %9 = vsyncpa [#allocation5], 0
    %s10 = scalar_lea.sflag [#allocation5], 1
    %11 = vsyncpa %s10, 0
    %12 = vsyncpa [#allocation6], 0
    %s13 = scalar_lea.sflag [#allocation6], 1
    %14 = vsyncpa %s13, 0
    loop: start=0, step=1, limit=4
    $region2: #{tpu_custom_call.1} parent=1 // loop_pre_header
      _
    $region3: #{tpu_custom_call.1} parent=1 // loop_header
      %s16 = sphi 0, %s20
      %p17 = scmp.ge.s32.totalorder %s16, 4
      %s23 = sphi 0, %s35
      %s24 = sphi 0, %s31
      %s25 = sphi 0, %s23
      %s26 = sphi 0, %s24
      %s27 = sphi 0, %s25
      %s28 = sphi 0, %s26
      %s40 = sphi 0, %s42
      %s43 = sphi 0, %s40
      %s44 = sphi 0, %s43
      %s60 = sphi 0, %s44
      %s66 = sphi 0, %s68
      %s69 = sphi 0, %s66
      %s70 = sphi 0, %s69
      %s86 = sphi 0, %s70
      %s94 = sphi 0, %s96
      %s97 = sphi 0, %s94
      %s98 = sphi 0, %s97
      %s114 = sphi 0, %s98
    $region4: #{tpu_custom_call.1} parent=1 // loop_header_branch
      %19 = sbr.rel (%p17) target = $region8
    $region5: #{tpu_custom_call.1} parent=1 // loop_body
      %s21 = ssub.s32 %s16, 1
      %s22 = ssub.s32 %s16, 2
      %s29 = sadd.s32 1, %s24
      %p30 = scmp.ge.s32.totalorder %s29, 2
      %s31 = scalar_select %p30, 0, %s29
      %s32 = sadd.s32 1, %s23
      %s33 = scalar_select %p30, %s32, %s23
      %p34 = scmp.ge.s32.totalorder %s33, 1
      %s35 = scalar_select %p34, 0, %s33
      %s36 = ssub.s32 %s23, %s35
      %s37 = ssub.s32 %s24, %s31
      %s38 = sor.u32 %s36, %s37
      %p39 = scmp.eq.s32.totalorder %s38, 0
      %s41 = sadd.s32 %s40, 1
      %s42 = scalar_select %p39, %s40, %s41
      %p45 = pneg %p39
      %p46 = scmp.eq.s32.totalorder %s16, 1
      %p47 = por %p45, %p46
      %p48 = scmp.ne.s32.totalorder %s40, %s43
      %p49 = scmp.eq.s32.totalorder %s16, 0
      %p50 = por %p48, %p49
      %p51 = scmp.ne.s32.totalorder %s40, %s43
      %p52 = scmp.eq.s32.totalorder %s21, 1
      %p53 = por %p51, %p52
      %p54 = scmp.ne.s32.totalorder %s43, %s44
      %p55 = scmp.eq.s32.totalorder %s21, 0
      %p56 = por %p54, %p55
      %p57 = scmp.ne.s32.totalorder %s43, %s44
      %p58 = scmp.eq.s32.totalorder %s22, 1
      %p59 = por %p57, %p58
      %p61 = scmp.ne.s32.totalorder %s44, %s60
      %p62 = scmp.eq.s32.totalorder %s22, 0
      %p63 = por %p61, %p62
      %s64 = ssub.s32 %s23, %s35
      %p65 = scmp.eq.s32.totalorder %s64, 0
      %s67 = sadd.s32 %s66, 1
      %s68 = scalar_select %p65, %s66, %s67
      %p71 = pneg %p65
      %p72 = scmp.eq.s32.totalorder %s16, 1
      %p73 = por %p71, %p72
      %p74 = scmp.ne.s32.totalorder %s66, %s69
      %p75 = scmp.eq.s32.totalorder %s16, 0
      %p76 = por %p74, %p75
      %p77 = scmp.ne.s32.totalorder %s66, %s69
      %p78 = scmp.eq.s32.totalorder %s21, 1
      %p79 = por %p77, %p78
      %p80 = scmp.ne.s32.totalorder %s69, %s70
      %p81 = scmp.eq.s32.totalorder %s21, 0
      %p82 = por %p80, %p81
      %p83 = scmp.ne.s32.totalorder %s69, %s70
      %p84 = scmp.eq.s32.totalorder %s22, 1
      %p85 = por %p83, %p84
      %p87 = scmp.ne.s32.totalorder %s70, %s86
      %p88 = scmp.eq.s32.totalorder %s22, 0
      %p89 = por %p87, %p88
      %s90 = ssub.s32 %s23, %s35
      %s91 = ssub.s32 %s24, %s31
      %s92 = sor.u32 %s90, %s91
      %p93 = scmp.eq.s32.totalorder %s92, 0
      %s95 = sadd.s32 %s94, 1
      %s96 = scalar_select %p93, %s94, %s95
      %p99 = pneg %p93
      %p100 = scmp.eq.s32.totalorder %s16, 1
      %p101 = por %p99, %p100
      %p102 = scmp.ne.s32.totalorder %s94, %s97
      %p103 = scmp.eq.s32.totalorder %s16, 0
      %p104 = por %p102, %p103
      %p105 = scmp.ne.s32.totalorder %s94, %s97
      %p106 = scmp.eq.s32.totalorder %s21, 1
      %p107 = por %p105, %p106
      %p108 = scmp.ne.s32.totalorder %s97, %s98
      %p109 = scmp.eq.s32.totalorder %s21, 0
      %p110 = por %p108, %p109
      %p111 = scmp.ne.s32.totalorder %s97, %s98
      %p112 = scmp.eq.s32.totalorder %s22, 1
      %p113 = por %p111, %p112
      %p115 = scmp.ne.s32.totalorder %s98, %s114
      %p116 = scmp.eq.s32.totalorder %s22, 0
      %p117 = por %p115, %p116
      %p118 = scmp.le.s32.totalorder 1, %s16
      %p119 = scmp.lt.s32.totalorder %s16, 3
      %p120 = pnand %p118, %p119
      %p121 = pneg %p120
      // Predicated region
      $region9: #{tpu_custom_call.1} parent=5 // pred_check
        _
      $region10: #{tpu_custom_call.1} parent=5 // pred_check_branch
        %123 = sbr.rel (%p120) target = $region12
      $region11: #{tpu_custom_call.1} parent=5 // pred_region
        %s124 = ssub.s32 %s16, 1
        // Predicated region
        $region13: #{tpu_custom_call.1} parent=11 // pred_check
          %p125 = pneg %p82
        $region14: #{tpu_custom_call.1} parent=11 // pred_check_branch
          %127 = sbr.rel (%p125) target = $region16
        $region15: #{tpu_custom_call.1} parent=11 // pred_region
          %p128 = scmp.lt.s32.totalorder %s25, 0
          %s129 = scalar_select %p128, %s25, 0
          %s130 = smul.addr %s129, 8
          %s131 = scalar_lea.vmem %s2, %s130
        $region16: #{tpu_custom_call.1} parent=11 // pred_fallthru
          _
      $region12: #{tpu_custom_call.1} parent=5 // pred_fallthru
        _
      %p132 = scmp.lt.s32.totalorder %s16, 2
      // Predicated region
      $region17: #{tpu_custom_call.1} parent=5 // pred_check
        %p133 = pneg %p132
      $region18: #{tpu_custom_call.1} parent=5 // pred_check_branch
        %135 = sbr.rel (%p133) target = $region20
      $region19: #{tpu_custom_call.1} parent=5 // pred_region
        // Predicated region
        $region21: #{tpu_custom_call.1} parent=19 // pred_check
          %p136 = pneg %p50
        $region22: #{tpu_custom_call.1} parent=19 // pred_check_branch
          %138 = sbr.rel (%p136) target = $region24
        $region23: #{tpu_custom_call.1} parent=19 // pred_region
          %s139 = sand.u32 %s40, 1
          %s140 = scalar_lea.sflag [#allocation5], %s139
          %s141 = sand.u32 %s40, 1
          %s142 = smul.addr %s141, 8
          %s143 = scalar_lea.vmem [#allocation4], %s142
          %s145 = ssub.s32 128, 128
          %146 = vsyncadd %s140, %s145
          %s147 = smul.addr %s23, 2
          %s148 = sadd.s32 %s24, %s147
          %s149 = smul.addr %s148, 128
          %s150 = scalar_lea.hbm %s1, %s149
          %s152 = sshll.u32 %s143, 4
          %s153 = int_to_ptr.vmem [resolvable:$true] %s152
          %155 = dma.hbm_to_vmem [thread:$0]  %s150, 128, %s153, %s140
        $region24: #{tpu_custom_call.1} parent=19 // pred_fallthru
          _
      $region20: #{tpu_custom_call.1} parent=5 // pred_fallthru
        _
      %p156 = scmp.le.s32.totalorder 1, %s16
      %p157 = scmp.lt.s32.totalorder %s16, 3
      %p158 = pnand %p156, %p157
      %p159 = pneg %p158
      // Predicated region
      $region25: #{tpu_custom_call.1} parent=5 // pred_check
        _
      $region26: #{tpu_custom_call.1} parent=5 // pred_check_branch
        %161 = sbr.rel (%p158) target = $region28
      $region27: #{tpu_custom_call.1} parent=5 // pred_region
        %s162 = ssub.s32 %s16, 1
        %s163 = sand.u32 %s43, 1
        %s164 = scalar_lea.sflag [#allocation5], %s163
        %s165 = sand.u32 %s43, 1
        %s166 = smul.addr %s165, 8
        %s167 = scalar_lea.vmem [#allocation4], %s166
        // Predicated region
        $region29: #{tpu_custom_call.1} parent=27 // pred_check
          %p168 = pneg %p56
        $region30: #{tpu_custom_call.1} parent=27 // pred_check_branch
          %170 = sbr.rel (%p168) target = $region32
        $region31: #{tpu_custom_call.1} parent=27 // pred_region
          %171 = dma.done %s164, 128
        $region32: #{tpu_custom_call.1} parent=27 // pred_fallthru
          _
        %s172 = sand.u32 %s43, 1
        %s173 = scalar_lea.sflag [#allocation5], %s172
        %s174 = sand.u32 %s43, 1
        %s175 = smul.addr %s174, 8
        %s176 = scalar_lea.vmem [#allocation4], %s175
        %p177 = pneg %p56
        %p178 = pneg %p53
        %p179 = scmp.lt.s32.totalorder %s25, 0
        %s180 = scalar_select %p179, %s25, 0
        %s181 = smul.addr %s180, 8
        %s182 = scalar_lea.vmem %s2, %s181
        %p183 = pneg %p82
        %p184 = pneg %p79
        %p185 = pneg %p110
        %p186 = pneg %p107
        %s187 = sand.u32 %s97, 1
        %s188 = scalar_lea.sflag [#allocation6], %s187
        %s189 = sand.u32 %s97, 1
        %s190 = smul.addr %s189, 8
        %s191 = scalar_lea.vmem [#allocation7], %s190
        %p192 = scmp.lt.s32.totalorder %s25, 0
        %s193 = scalar_select %p192, %s25, 0
        %s194 = smul.addr %s193, 8
        %s195 = scalar_lea.vmem %s2, %s194
        %v196 = vlaneseq
        %v197 = vshrl.u32 %v196, 7
        %s198 = smul.u32 %s25, 8
        %v199 = vstv %s198
        %v200 = vadd.s32 %v197, %v199
        %v201 = vlaneseq
        %v202 = vand.u32 %v201, 127
        %s203 = smul.u32 %s26, 128
        %v204 = vstv %s203
        %v205 = vadd.s32 %v202, %v204
        %v206 = vmul.u32 %v200, 2654435769
        %s207 = sld [smem:[#allocation3]]
        %v208 = vstv %s207
        %v209 = vadd.s32 %v206, %v208
        %v210 = vshra.s32 %v209, 16
        %v211 = vand.u32 %v210, 65535
        %v212 = vxor.u32 %v209, %v211
        %v213 = vmul.u32 %v212, 2246822507
        %v214 = vshra.s32 %v213, 13
        %v215 = vand.u32 %v214, 524287
        %v216 = vxor.u32 %v213, %v215
        %v217 = vmul.u32 %v216, 3266489909
        %v218 = vshra.s32 %v217, 16
        %v219 = vand.u32 %v218, 65535
        %v220 = vxor.u32 %v217, %v219
        %v221 = vmul.u32 %v205, 2246822519
        %v222 = vxor.u32 %v220, %v221
        %v223 = vshra.s32 %v222, 16
        %v224 = vand.u32 %v223, 65535
        %v225 = vxor.u32 %v222, %v224
        %v226 = vmul.u32 %v225, 2246822507
        %v227 = vshra.s32 %v226, 13
        %v228 = vand.u32 %v227, 524287
        %v229 = vxor.u32 %v226, %v228
        %v230 = vmul.u32 %v229, 3266489909
        %v231 = vshra.s32 %v230, 16
        %v232 = vand.u32 %v231, 65535
        %v233 = vxor.u32 %v230, %v232
        %v234 = vshra.s32 %v233, 9
        %v235 = vand.u32 %v234, 8388607
        %v236 = vcvt.s32.f32 %v235
        %v237 = vmul.f32 %v236, 1.1920929e-07
        %v238 = vld [vmem:[%s195] sm:$0xff]
        %v239 = vadd.f32 %v237, 1e-20
        %v240 = vsub.f32 1.0, %v237
        %v241 = vadd.f32 %v240, 1e-20
        %v242 = vrcp.pop %v241
        %v243 = vmul.f32 %v239, %v242
        %v244 = vlog2.pop %v243
        %v245 = vmul.f32 %v244, 0.6931472
        %v246 = vmul.f32 %v245, 1000.0
        %248 = vset.pattern.permute.xlu0 0
        %249 = vperm.xlu0 %248, %v238
        %v250 = vpop.permute.xlu0 %249
        %v252 = vadd.f32 %v246, %v250
        %v253 = vmul.f32 %v252, 0.5
        %v254 = vtanh.pop %v253
        %v255 = vmul.f32 %v254, 0.5
        %v256 = vadd.f32 %v255, 0.5
        %v257 = vld [vmem:[%s167] sm:$0xff]
        %258 = vset.pattern.permute.xlu0 1
        %259 = vperm.xlu0 %258, %v238
        %v260 = vpop.permute.xlu0 %259
        %v262 = vmul.f32 %v256, %v260
        %v263 = vmul.f32 %v257, %v262
        %264 = vst [vmem:[%s191] sm:$0xff] %v263
        %s265 = sand.u32 %s97, 1
        %s266 = scalar_lea.sflag [#allocation6], %s265
        %s267 = sand.u32 %s97, 1
        %s268 = smul.addr %s267, 8
        %s269 = scalar_lea.vmem [#allocation7], %s268
        // Predicated region
        $region33: #{tpu_custom_call.1} parent=27 // pred_check
          %p270 = pneg %p107
        $region34: #{tpu_custom_call.1} parent=27 // pred_check_branch
          %272 = sbr.rel (%p270) target = $region36
        $region35: #{tpu_custom_call.1} parent=27 // pred_region
          %s274 = ssub.s32 128, 128
          %275 = vsyncadd %s266, %s274
          %s276 = smul.addr %s25, 2
          %s277 = sadd.s32 %s26, %s276
          %s278 = smul.addr %s277, 128
          %s279 = scalar_lea.hbm %s3, %s278
          %s281 = sshll.u32 %s269, 4
          %s282 = int_to_ptr.vmem [resolvable:$true] %s281
          %284 = dma.vmem_to_hbm [thread:$0]  %s282, 128, %s279, %s266
        $region36: #{tpu_custom_call.1} parent=27 // pred_fallthru
          _
      $region28: #{tpu_custom_call.1} parent=5 // pred_fallthru
        _
      %p285 = scmp.le.s32.totalorder 2, %s16
      // Predicated region
      $region37: #{tpu_custom_call.1} parent=5 // pred_check
        %p286 = pneg %p285
      $region38: #{tpu_custom_call.1} parent=5 // pred_check_branch
        %288 = sbr.rel (%p286) target = $region40
      $region39: #{tpu_custom_call.1} parent=5 // pred_region
        %s289 = ssub.s32 %s16, 2
        // Predicated region
        $region41: #{tpu_custom_call.1} parent=39 // pred_check
          %p290 = pneg %p113
        $region42: #{tpu_custom_call.1} parent=39 // pred_check_branch
          %292 = sbr.rel (%p290) target = $region44
        $region43: #{tpu_custom_call.1} parent=39 // pred_region
          %s293 = sand.u32 %s98, 1
          %s294 = scalar_lea.sflag [#allocation6], %s293
          %s295 = sand.u32 %s98, 1
          %s296 = smul.addr %s295, 8
          %s297 = scalar_lea.vmem [#allocation7], %s296
          %298 = dma.done %s294, 128
        $region44: #{tpu_custom_call.1} parent=39 // pred_fallthru
          _
      $region40: #{tpu_custom_call.1} parent=5 // pred_fallthru
        _
    $region6: #{tpu_custom_call.1} parent=1 // loop_footer
      %s20 = sadd.s32 1, %s16
    $region7: #{tpu_custom_call.1} parent=1 // loop_footer_branch
      %15 = sbr.rel target = $region3
    $region8: #{tpu_custom_call.1} parent=1 // loop_exit
      _
    %299 = vsyncpa [#allocation5], 1
    %s300 = scalar_lea.sflag [#allocation5], 1
    %301 = vsyncpa %s300, 1
    %302 = vsyncpa [#allocation6], 1
    %s303 = scalar_lea.sflag [#allocation6], 1
    %304 = vsyncpa %s303, 1

</llo_original>
